<compile_context>
chip_gen: v7x
topology: tpu7x:2x2x1
jax: 0.10.0
libtpu: 0.0.40
codegen_flags: <defaults>
</compile_context>

<pallas_src>
import jax
import jax.numpy as jnp
from jax.experimental import pallas as pl
from jax.experimental.pallas import tpu as pltpu


def _mlp_kernel(xT_ref, w1_ref, b1_ref, w2_ref, b2_ref, w3_ref, b3_ref, o_ref):
    """q^T = W3 @ relu(W2 @ relu(W1 @ x^T + b1) + b2) + b3 on one batch tile."""
    xT = xT_ref[...]                                                  # (4, TB)
    h1 = jnp.dot(w1_ref[...], xT,
                 preferred_element_type=jnp.float32) + b1_ref[...]   # (32, TB)
    h1 = jnp.maximum(h1, 0.0)
    h2 = jnp.dot(w2_ref[...], h1,
                 preferred_element_type=jnp.float32) + b2_ref[...]   # (H, TB)
    h2 = jnp.maximum(h2, 0.0)
    q = jnp.dot(w3_ref[...], h2,
                preferred_element_type=jnp.float32) + b3_ref[...]    # (A, TB)
    o_ref[...] = q.astype(o_ref.dtype)


def net_forward(states, params, *, batch_tile=2048):
    """Pallas forward for Net.  states: [B, 4] float32 -> q_values [B, A]."""
    w1, b1, w2, b2, w3, b3 = params        # PyTorch layout: w (out, in), b (out, 1)
    B = states.shape[0]
    in_feat = states.shape[1]
    num_actions = w3.shape[0]

    # Batch tile must be a lane multiple so stores are unmasked along lanes.
    batch_tile = max(128, 128 * (batch_tile // 128))

    # Feature-major / batch-last so batch maps to the 128-lane axis.
    xT = states.T                          # (4, B)

    # Pad batch up to a lane multiple (128); tile it if larger than batch_tile.
    Bp = 128 * pl.cdiv(max(B, 1), 128)
    if Bp > batch_tile:
        TB = batch_tile
        Bp = TB * pl.cdiv(Bp, TB)
    else:
        TB = Bp
    if Bp != B:
        xT = jnp.pad(xT, ((0, 0), (0, Bp - B)))

    grid = (Bp // TB,)

    const_spec = lambda a: pl.BlockSpec(a.shape, lambda i: (0, 0))
    in_specs = [
        pl.BlockSpec((in_feat, TB), lambda i: (0, i)),   # x tile streams over batch
        const_spec(w1), const_spec(b1),                   # params stay VMEM-resident
        const_spec(w2), const_spec(b2),
        const_spec(w3), const_spec(b3),
    ]
    out_specs = pl.BlockSpec((num_actions, TB), lambda i: (0, i))

    qT = pl.pallas_call(
        _mlp_kernel,
        out_shape=jax.ShapeDtypeStruct((num_actions, Bp), jnp.float32),
        grid=grid,
        in_specs=in_specs,
        out_specs=out_specs,
        compiler_params=pltpu.CompilerParams(
            dimension_semantics=("parallel",)),
    )(xT, w1, b1, w2, b2, w3, b3)

    return qT[:, :B].T                     # (B, num_actions)


def init_params(key, num_actions=4, hidden_layer_size=10, input_state=4):
    """nn.Linear-style uniform(-1/sqrt(fan_in), 1/sqrt(fan_in)) init.
    Weights stored PyTorch-style (out, in); biases (out, 1)."""
    def linear(k, fan_in, fan_out):
        kw, kb = jax.random.split(k)
        bound = 1.0 / jnp.sqrt(fan_in)
        w = jax.random.uniform(kw, (fan_out, fan_in), jnp.float32, -bound, bound)
        b = jax.random.uniform(kb, (fan_out, 1), jnp.float32, -bound, bound)
        return w, b

    k1, k2, k3 = jax.random.split(key, 3)
    w1, b1 = linear(k1, input_state, 32)
    w2, b2 = linear(k2, 32, hidden_layer_size)
    w3, b3 = linear(k3, hidden_layer_size, num_actions)
    return (w1, b1, w2, b2, w3, b3)


def net_forward_ref(states, params):
    """Pure-JAX reference (matches PyTorch Net.forward)."""
    w1, b1, w2, b2, w3, b3 = params
    h1 = jnp.maximum(states @ w1.T + b1[:, 0], 0.0)
    h2 = jnp.maximum(h1 @ w2.T + b2[:, 0], 0.0)
    return h2 @ w3.T + b3[:, 0]


if __name__ == "__main__":
    key = jax.random.PRNGKey(0)
    kp, kx1, kx2 = jax.random.split(key, 3)

    num_actions = 4
    hidden_layer_size = 10

    params = init_params(kp, num_actions=num_actions,
                         hidden_layer_size=hidden_layer_size)

    # Small RL-style batch (exercises lane padding 8 -> 128, single grid step).
    batch = 8
    states = jax.random.normal(kx1, (batch, 4), dtype=jnp.float32)
    q_values = jax.block_until_ready(net_forward(states, params))
    q_ref = net_forward_ref(states, params)
    assert q_values.shape == (batch, num_actions)
    assert jnp.allclose(q_values, q_ref, atol=1e-5, rtol=1e-5), \
        "mismatch vs reference (B=8)"

    # Larger, non-multiple batch with a small tile to exercise grid > 1 + padding.
    batch2 = 300
    states2 = jax.random.normal(kx2, (batch2, 4), dtype=jnp.float32)
    q2 = jax.block_until_ready(net_forward(states2, params, batch_tile=128))
    q2_ref = net_forward_ref(states2, params)
    assert q2.shape == (batch2, num_actions)
    assert jnp.allclose(q2, q2_ref, atol=1e-5, rtol=1e-5), \
        "mismatch vs reference (B=300)"

    print("KERNEL_OK")
</pallas_src>

<mosaic_0001>
module attributes {stable_mosaic.version = 11 : i64} {
  func.func @_mlp_kernel(%arg0: i32, %arg1: memref<4x128xf32, #tpu.memory_space<vmem>>, %arg2: memref<32x4xf32, #tpu.memory_space<vmem>>, %arg3: memref<32x1xf32, #tpu.memory_space<vmem>>, %arg4: memref<10x32xf32, #tpu.memory_space<vmem>>, %arg5: memref<10x1xf32, #tpu.memory_space<vmem>>, %arg6: memref<4x10xf32, #tpu.memory_space<vmem>>, %arg7: memref<4x1xf32, #tpu.memory_space<vmem>>, %arg8: memref<4x128xf32, #tpu.memory_space<vmem>>) attributes {dimension_semantics = [#tpu.dimension_semantics<parallel>], iteration_bounds = array<i64: 1>, scalar_prefetch = 0 : i64, scratch_operands = 0 : i64, tpu.core_type = #tpu.core_type<tc>, window_params = [{transform_indices = @transform_0, window_bounds = array<i64: 4, 128>}, {pipeline_mode = #tpu.pipeline_mode<synchronous>, transform_indices = @transform_1, window_bounds = array<i64: 32, 4>}, {pipeline_mode = #tpu.pipeline_mode<synchronous>, transform_indices = @transform_2, window_bounds = array<i64: 32, 1>}, {pipeline_mode = #tpu.pipeline_mode<synchronous>, transform_indices = @transform_3, window_bounds = array<i64: 10, 32>}, {pipeline_mode = #tpu.pipeline_mode<synchronous>, transform_indices = @transform_4, window_bounds = array<i64: 10, 1>}, {pipeline_mode = #tpu.pipeline_mode<synchronous>, transform_indices = @transform_5, window_bounds = array<i64: 4, 10>}, {pipeline_mode = #tpu.pipeline_mode<synchronous>, transform_indices = @transform_6, window_bounds = array<i64: 4, 1>}, {transform_indices = @transform_7, window_bounds = array<i64: 4, 128>}]} {
    %c0 = arith.constant 0 : index
    %c0_0 = arith.constant 0 : index
    %0 = vector.load %arg1[%c0, %c0_0] : memref<4x128xf32, #tpu.memory_space<vmem>>, vector<4x128xf32>
    %c0_1 = arith.constant 0 : index
    %c0_2 = arith.constant 0 : index
    %1 = vector.load %arg2[%c0_1, %c0_2] : memref<32x4xf32, #tpu.memory_space<vmem>>, vector<32x4xf32>
    %cst = arith.constant dense<0.000000e+00> : vector<32x128xf32>
    %2 = tpu.matmul %1, %0, %cst {dimension_numbers = #tpu.dot_dimension_numbers<[1], [0], [0], [1], [0, 0, 1, 1], [], []>} : vector<32x4xf32>, vector<4x128xf32>, vector<32x128xf32> -> vector<32x128xf32>
    %c0_3 = arith.constant 0 : index
    %c0_4 = arith.constant 0 : index
    %3 = vector.load %arg3[%c0_3, %c0_4] : memref<32x1xf32, #tpu.memory_space<vmem>>, vector<32x1xf32>
    %4 = vector.broadcast %3 : vector<32x1xf32> to vector<32x128xf32>
    %5 = arith.addf %2, %4 : vector<32x128xf32>
    %cst_5 = arith.constant 0.000000e+00 : f32
    %6 = vector.broadcast %cst_5 : f32 to vector<32x128xf32>
    %7 = arith.maximumf %5, %6 : vector<32x128xf32>
    %c0_6 = arith.constant 0 : index
    %c0_7 = arith.constant 0 : index
    %8 = vector.load %arg4[%c0_6, %c0_7] : memref<10x32xf32, #tpu.memory_space<vmem>>, vector<10x32xf32>
    %cst_8 = arith.constant dense<0.000000e+00> : vector<10x128xf32>
    %9 = tpu.matmul %8, %7, %cst_8 {dimension_numbers = #tpu.dot_dimension_numbers<[1], [0], [0], [1], [0, 0, 1, 1], [], []>} : vector<10x32xf32>, vector<32x128xf32>, vector<10x128xf32> -> vector<10x128xf32>
    %c0_9 = arith.constant 0 : index
    %c0_10 = arith.constant 0 : index
    %10 = vector.load %arg5[%c0_9, %c0_10] : memref<10x1xf32, #tpu.memory_space<vmem>>, vector<10x1xf32>
    %11 = vector.broadcast %10 : vector<10x1xf32> to vector<10x128xf32>
    %12 = arith.addf %9, %11 : vector<10x128xf32>
    %cst_11 = arith.constant 0.000000e+00 : f32
    %13 = vector.broadcast %cst_11 : f32 to vector<10x128xf32>
    %14 = arith.maximumf %12, %13 : vector<10x128xf32>
    %c0_12 = arith.constant 0 : index
    %c0_13 = arith.constant 0 : index
    %15 = vector.load %arg6[%c0_12, %c0_13] : memref<4x10xf32, #tpu.memory_space<vmem>>, vector<4x10xf32>
    %cst_14 = arith.constant dense<0.000000e+00> : vector<4x128xf32>
    %16 = tpu.matmul %15, %14, %cst_14 {dimension_numbers = #tpu.dot_dimension_numbers<[1], [0], [0], [1], [0, 0, 1, 1], [], []>} : vector<4x10xf32>, vector<10x128xf32>, vector<4x128xf32> -> vector<4x128xf32>
    %c0_15 = arith.constant 0 : index
    %c0_16 = arith.constant 0 : index
    %17 = vector.load %arg7[%c0_15, %c0_16] : memref<4x1xf32, #tpu.memory_space<vmem>>, vector<4x1xf32>
    %18 = vector.broadcast %17 : vector<4x1xf32> to vector<4x128xf32>
    %19 = arith.addf %16, %18 : vector<4x128xf32>
    %c0_17 = arith.constant 0 : index
    %c0_18 = arith.constant 0 : index
    %20 = vector.load %arg8[%c0_17, %c0_18] : memref<4x128xf32, #tpu.memory_space<vmem>>, vector<4x128xf32>
    tpu.vector_store %arg8[%c0_17, %c0_18], %19 {strides = array<i32>} : memref<4x128xf32, #tpu.memory_space<vmem>>, vector<4x128xf32>,
    return
  }
  func.func @transform_0(%arg0: i32) -> (i32, i32) {
    %c0_i32 = arith.constant 0 : i32
    %c0_i32_0 = arith.constant 0 : i32
    return %c0_i32, %arg0 : i32, i32
  }
  func.func @transform_1(%arg0: i32) -> (i32, i32) {
    %c0_i32 = arith.constant 0 : i32
    %c0_i32_0 = arith.constant 0 : i32
    %c0_i32_1 = arith.constant 0 : i32
    return %c0_i32, %c0_i32_0 : i32, i32
  }
  func.func @transform_2(%arg0: i32) -> (i32, i32) {
    %c0_i32 = arith.constant 0 : i32
    %c0_i32_0 = arith.constant 0 : i32
    %c0_i32_1 = arith.constant 0 : i32
    return %c0_i32, %c0_i32_0 : i32, i32
  }
  func.func @transform_3(%arg0: i32) -> (i32, i32) {
    %c0_i32 = arith.constant 0 : i32
    %c0_i32_0 = arith.constant 0 : i32
    %c0_i32_1 = arith.constant 0 : i32
    return %c0_i32, %c0_i32_0 : i32, i32
  }
  func.func @transform_4(%arg0: i32) -> (i32, i32) {
    %c0_i32 = arith.constant 0 : i32
    %c0_i32_0 = arith.constant 0 : i32
    %c0_i32_1 = arith.constant 0 : i32
    return %c0_i32, %c0_i32_0 : i32, i32
  }
  func.func @transform_5(%arg0: i32) -> (i32, i32) {
    %c0_i32 = arith.constant 0 : i32
    %c0_i32_0 = arith.constant 0 : i32
    %c0_i32_1 = arith.constant 0 : i32
    return %c0_i32, %c0_i32_0 : i32, i32
  }
  func.func @transform_6(%arg0: i32) -> (i32, i32) {
    %c0_i32 = arith.constant 0 : i32
    %c0_i32_0 = arith.constant 0 : i32
    %c0_i32_1 = arith.constant 0 : i32
    return %c0_i32, %c0_i32_0 : i32, i32
  }
  func.func @transform_7(%arg0: i32) -> (i32, i32) {
    %c0_i32 = arith.constant 0 : i32
    %c0_i32_0 = arith.constant 0 : i32
    return %c0_i32, %arg0 : i32, i32
  }
}

</mosaic_0001>

<llo_original>
// kernel: tpu_custom_call.1
$region0: #{tpu_custom_call.1}
  #allocation0 [shape = 'u32[]', space=smem, size = 0x4, offset = 0x4, fixed_abs, tag = 'smem constant byte address 0x4 - core index']
  #allocation1 [shape = 'u32[144,128]{1,0:T(1,128)}', space=vmem, size = 0x12000, scoped, tag = 'internal scratch']
  %s0 = inlined_call_operand.vmem [shape: f32[4,128], index: 0, kind: input, shape index: {}]
  %s1 = inlined_call_operand.vmem [shape: f32[32,4], index: 1, kind: input, shape index: {}]
  %s2 = inlined_call_operand.vmem [shape: f32[32,1], index: 2, kind: input, shape index: {}]
  %s3 = inlined_call_operand.vmem [shape: f32[10,32], index: 3, kind: input, shape index: {}]
  %s4 = inlined_call_operand.vmem [shape: f32[10,1], index: 4, kind: input, shape index: {}]
  %s5 = inlined_call_operand.vmem [shape: f32[4,10], index: 5, kind: input, shape index: {}]
  %s6 = inlined_call_operand.vmem [shape: f32[4,1], index: 6, kind: input, shape index: {}]
  %s7 = inlined_call_operand.hbm [shape: f32[4,128], index: 7, kind: output, shape index: {}]
  %s8 = sld [smem:[#allocation0]]
  $region38: #{tpu_custom_call.1} parent=0
    _
  %s10 = ssub.s32 1, %s8
  %s11 = scalar_select 0, %s10, %s8
  $region1: #{tpu_custom_call.1} parent=0
    #allocation2 [shape = 'u8[2048]{0}', space=vmem, size = 0x800, scoped, tag = 'output window, operand 0, single buffered']
    #allocation3 [shape = 's32[1]{0}', space=sflag, size = 0x4, scoped, tag = 'scoped memory for tpu_custom_call.1']
    %12 = vsyncpa [#allocation3], 0
    // Predicated region
    $region2: #{tpu_custom_call.1} parent=1 // pred_check
      _
    $region3: #{tpu_custom_call.1} parent=1 // pred_check_branch
      %14 = sbr.rel (0) target = $region5
    $region4: #{tpu_custom_call.1} parent=1 // pred_region
      _
    $region5: #{tpu_custom_call.1} parent=1 // pred_fallthru
      _
    // Predicated region
    $region6: #{tpu_custom_call.1} parent=1 // pred_check
      _
    $region7: #{tpu_custom_call.1} parent=1 // pred_check_branch
      %16 = sbr.rel (0) target = $region9
    $region8: #{tpu_custom_call.1} parent=1 // pred_region
      _
    $region9: #{tpu_custom_call.1} parent=1 // pred_fallthru
      _
    // Predicated region
    $region10: #{tpu_custom_call.1} parent=1 // pred_check
      _
    $region11: #{tpu_custom_call.1} parent=1 // pred_check_branch
      %18 = sbr.rel (0) target = $region13
    $region12: #{tpu_custom_call.1} parent=1 // pred_region
      _
    $region13: #{tpu_custom_call.1} parent=1 // pred_fallthru
      _
    // Predicated region
    $region14: #{tpu_custom_call.1} parent=1 // pred_check
      _
    $region15: #{tpu_custom_call.1} parent=1 // pred_check_branch
      %20 = sbr.rel (0) target = $region17
    $region16: #{tpu_custom_call.1} parent=1 // pred_region
      _
    $region17: #{tpu_custom_call.1} parent=1 // pred_fallthru
      _
    // Predicated region
    $region18: #{tpu_custom_call.1} parent=1 // pred_check
      _
    $region19: #{tpu_custom_call.1} parent=1 // pred_check_branch
      %22 = sbr.rel (0) target = $region21
    $region20: #{tpu_custom_call.1} parent=1 // pred_region
      _
    $region21: #{tpu_custom_call.1} parent=1 // pred_fallthru
      _
    // Predicated region
    $region22: #{tpu_custom_call.1} parent=1 // pred_check
      _
    $region23: #{tpu_custom_call.1} parent=1 // pred_check_branch
      %24 = sbr.rel (0) target = $region25
    $region24: #{tpu_custom_call.1} parent=1 // pred_region
      _
    $region25: #{tpu_custom_call.1} parent=1 // pred_fallthru
      _
    // Predicated region
    $region26: #{tpu_custom_call.1} parent=1 // pred_check
      _
    $region27: #{tpu_custom_call.1} parent=1 // pred_check_branch
      %26 = sbr.rel (0) target = $region29
    $region28: #{tpu_custom_call.1} parent=1 // pred_region
      _
    $region29: #{tpu_custom_call.1} parent=1 // pred_fallthru
      _
    %v27 = vld [vmem:[%s0] sm:$0xf]
    %v28 = vld [vmem:[%s1] sm:$0xff]
    %v29 = vld [vmem:[%s1 + $0x8] sm:$0xff]
    %v30 = vld [vmem:[%s1 + $0x10] sm:$0xff]
    %v31 = vld [vmem:[%s1 + $0x18] sm:$0xff]
    %v32 = vld [vmem:[%s2] sm:$0xff]
    %v33 = vld [vmem:[%s2 + $0x8] sm:$0xff]
    %v34 = vld [vmem:[%s2 + $0x10] sm:$0xff]
    %v35 = vld [vmem:[%s2 + $0x18] sm:$0xff]
    %37 = vset.pattern.permute.xlu0 0
    %38 = vperm.xlu0 %37, %v32
    %v39 = vpop.permute.xlu0 %38
    %42 = vset.pattern.permute.xlu0 0
    %43 = vperm.xlu0 %42, %v33
    %v44 = vpop.permute.xlu0 %43
    %47 = vset.pattern.permute.xlu0 0
    %48 = vperm.xlu0 %47, %v34
    %v49 = vpop.permute.xlu0 %48
    %52 = vset.pattern.permute.xlu0 0
    %53 = vperm.xlu0 %52, %v35
    %v54 = vpop.permute.xlu0 %53
    %vm56 = vcmask 31744
    %v58 = vsel %vm56, %v28, 0
    %v61 = vsel %vm56, %v29, 0
    %v64 = vsel %vm56, %v30, 0
    %v67 = vsel %vm56, %v31, 0
    %vm69 = vcmask 1043456
    %v71 = vsel %vm69, %v27, 0
    %73 = vmatprep.subr.mxu0 0.0
    %74 = vmatpush1.msra.mxu0 %v71
    %75 = vmatprep.subr.mxu0 0.0
    %76 = vmatpush1.msra.mxu0 0.0
    %77 = vmatprep.subr.mxu0 0.0
    %78 = vmatpush1.msra.mxu0 0.0
    %79 = vmatprep.subr.mxu0 0.0
    %80 = vmatpush1.msra.mxu0 0.0
    %81 = vmatprep.subr.mxu0 0.0
    %82 = vmatpush1.msra.mxu0 0.0
    %83 = vmatprep.subr.mxu0 0.0
    %84 = vmatpush1.msra.mxu0 0.0
    %85 = vmatprep.subr.mxu0 0.0
    %86 = vmatpush1.msra.mxu0 0.0
    %87 = vmatprep.subr.mxu0 0.0
    %88 = vmatpush1.msra.mxu0 0.0
    %89 = vmatprep.subr.mxu0 0.0
    %90 = vmatpush1.msra.mxu0 0.0
    %91 = vmatprep.subr.mxu0 0.0
    %92 = vmatpush1.msra.mxu0 0.0
    %93 = vmatprep.subr.mxu0 0.0
    %94 = vmatpush1.msra.mxu0 0.0
    %95 = vmatprep.subr.mxu0 0.0
    %96 = vmatpush1.msra.mxu0 0.0
    %97 = vmatprep.subr.mxu0 0.0
    %98 = vmatpush1.msra.mxu0 0.0
    %99 = vmatprep.subr.mxu0 0.0
    %100 = vmatpush1.msra.mxu0 0.0
    %101 = vmatprep.subr.mxu0 0.0
    %102 = vmatpush1.msra.mxu0 0.0
    %103 = vmatprep.subr.mxu0 0.0
    %104 = vmatpush1.msra.mxu0 0.0
    %105 = vmatprep.subr.mxu0 0.0
    %106 = vmatpush1.msra.mxu0 0.0
    %107 = vmatprep.subr.mxu0 0.0
    %108 = vmatpush1.msra.mxu0 0.0
    %109 = vmatprep.subr.mxu0 0.0
    %110 = vmatpush1.msra.mxu0 0.0
    %111 = vmatprep.subr.mxu0 0.0
    %112 = vmatpush1.msra.mxu0 0.0
    %113 = vmatprep.subr.mxu0 0.0
    %114 = vmatpush1.msra.mxu0 0.0
    %115 = vmatprep.subr.mxu0 0.0
    %116 = vmatpush1.msra.mxu0 0.0
    %117 = vmatprep.subr.mxu0 0.0
    %118 = vmatpush1.msra.mxu0 0.0
    %119 = vmatprep.subr.mxu0 0.0
    %120 = vmatpush1.msra.mxu0 0.0
    %121 = vmatprep.subr.mxu0 0.0
    %122 = vmatpush1.msra.mxu0 0.0
    %123 = vmatprep.subr.mxu0 0.0
    %124 = vmatpush1.msra.mxu0 0.0
    %125 = vmatprep.subr.mxu0 0.0
    %126 = vmatpush1.msra.mxu0 0.0
    %127 = vmatprep.subr.mxu0 0.0
    %128 = vmatpush1.msra.mxu0 0.0
    %129 = vmatprep.subr.mxu0 0.0
    %130 = vmatpush1.msra.mxu0 0.0
    %131 = vmatprep.subr.mxu0 0.0
    %132 = vmatpush1.msra.mxu0 0.0
    %133 = vmatprep.subr.mxu0 0.0
    %134 = vmatpush1.msra.mxu0 0.0
    %135 = vmatprep.subr.mxu0 0.0
    %136 = vmatpush1.msra.mxu0 0.0
    %137 = vmatprep.mubr.f32.mxu0 0.0
    %138 = vmatmul.mubr.f32.gmra.mrb[0].mxu0 %v58
    %v139 = vpop.f32.mrb[0].mxu0
    %v140 = vadd.f32 %v39, %v139
    %v141 = vpop.f32.mrb[0].mxu0
    %142 = vmatprep.mubr.f32.mxu0 0.0
    %143 = vmatmul.mubr.f32.gmra.mrb[0].mxu0 %v61
    %v144 = vpop.f32.mrb[0].mxu0
    %v145 = vadd.f32 %v44, %v144
    %v146 = vpop.f32.mrb[0].mxu0
    %147 = vmatprep.mubr.f32.mxu0 0.0
    %148 = vmatmul.mubr.f32.gmra.mrb[0].mxu0 %v64
    %v149 = vpop.f32.mrb[0].mxu0
    %v150 = vadd.f32 %v49, %v149
    %v151 = vpop.f32.mrb[0].mxu0
    %152 = vmatprep.mubr.f32.mxu0 0.0
    %153 = vmatmul.mubr.f32.gmra.mrb[0].mxu0 %v67
    %v154 = vpop.f32.mrb[0].mxu0
    %v155 = vadd.f32 %v54, %v154
    %v156 = vpop.f32.mrb[0].mxu0
    %157 = vdwg.mxu0
    %v158 = vmax.f32 %v140, 0.0
    %v159 = vmax.f32 %v145, 0.0
    %v160 = vmax.f32 %v150, 0.0
    %v161 = vmax.f32 %v155, 0.0
    %v162 = vld [vmem:[%s3] sm:$0xff]
    %v163 = vld [vmem:[%s3 + $0x8] sm:$0x3]
    %v164 = vld [vmem:[%s4] sm:$0xff]
    %v165 = vld [vmem:[%s4 + $0x8] sm:$0x3]
    %167 = vset.pattern.permute.xlu0 0
    %168 = vperm.xlu0 %167, %v164
    %v169 = vpop.permute.xlu0 %168
    %172 = vset.pattern.permute.xlu0 0
    %173 = vperm.xlu0 %172, %v165
    %v174 = vpop.permute.xlu0 %173
    %vm176 = vcmask 261120
    %v178 = vsel %vm176, %v162, 0
    %v181 = vsel %vm176, %v163, 0
    %183 = vmatprep.subr.mxu0 0.0
    %184 = vmatpush1.msra.mxu0 %v158
    %185 = vmatprep.subr.mxu0 0.0
    %186 = vmatpush1.msra.mxu0 %v159
    %187 = vmatprep.subr.mxu0 0.0
    %188 = vmatpush1.msra.mxu0 %v160
    %189 = vmatprep.subr.mxu0 0.0
    %190 = vmatpush1.msra.mxu0 %v161
    %191 = vmatprep.subr.mxu0 0.0
    %192 = vmatpush1.msra.mxu0 0.0
    %193 = vmatprep.subr.mxu0 0.0
    %194 = vmatpush1.msra.mxu0 0.0
    %195 = vmatprep.subr.mxu0 0.0
    %196 = vmatpush1.msra.mxu0 0.0
    %197 = vmatprep.subr.mxu0 0.0
    %198 = vmatpush1.msra.mxu0 0.0
    %199 = vmatprep.subr.mxu0 0.0
    %200 = vmatpush1.msra.mxu0 0.0
    %201 = vmatprep.subr.mxu0 0.0
    %202 = vmatpush1.msra.mxu0 0.0
    %203 = vmatprep.subr.mxu0 0.0
    %204 = vmatpush1.msra.mxu0 0.0
    %205 = vmatprep.subr.mxu0 0.0
    %206 = vmatpush1.msra.mxu0 0.0
    %207 = vmatprep.subr.mxu0 0.0
    %208 = vmatpush1.msra.mxu0 0.0
    %209 = vmatprep.subr.mxu0 0.0
    %210 = vmatpush1.msra.mxu0 0.0
    %211 = vmatprep.subr.mxu0 0.0
    %212 = vmatpush1.msra.mxu0 0.0
    %213 = vmatprep.subr.mxu0 0.0
    %214 = vmatpush1.msra.mxu0 0.0
    %215 = vmatprep.subr.mxu0 0.0
    %216 = vmatpush1.msra.mxu0 0.0
    %217 = vmatprep.subr.mxu0 0.0
    %218 = vmatpush1.msra.mxu0 0.0
    %219 = vmatprep.subr.mxu0 0.0
    %220 = vmatpush1.msra.mxu0 0.0
    %221 = vmatprep.subr.mxu0 0.0
    %222 = vmatpush1.msra.mxu0 0.0
    %223 = vmatprep.subr.mxu0 0.0
    %224 = vmatpush1.msra.mxu0 0.0
    %225 = vmatprep.subr.mxu0 0.0
    %226 = vmatpush1.msra.mxu0 0.0
    %227 = vmatprep.subr.mxu0 0.0
    %228 = vmatpush1.msra.mxu0 0.0
    %229 = vmatprep.subr.mxu0 0.0
    %230 = vmatpush1.msra.mxu0 0.0
    %231 = vmatprep.subr.mxu0 0.0
    %232 = vmatpush1.msra.mxu0 0.0
    %233 = vmatprep.subr.mxu0 0.0
    %234 = vmatpush1.msra.mxu0 0.0
    %235 = vmatprep.subr.mxu0 0.0
    %236 = vmatpush1.msra.mxu0 0.0
    %237 = vmatprep.subr.mxu0 0.0
    %238 = vmatpush1.msra.mxu0 0.0
    %239 = vmatprep.subr.mxu0 0.0
    %240 = vmatpush1.msra.mxu0 0.0
    %241 = vmatprep.subr.mxu0 0.0
    %242 = vmatpush1.msra.mxu0 0.0
    %243 = vmatprep.subr.mxu0 0.0
    %244 = vmatpush1.msra.mxu0 0.0
    %245 = vmatprep.subr.mxu0 0.0
    %246 = vmatpush1.msra.mxu0 0.0
    %247 = vmatprep.mubr.f32.mxu0 0.0
    %248 = vmatmul.mubr.f32.gmra.mrb[0].mxu0 %v178
    %v249 = vpop.f32.mrb[0].mxu0
    %v250 = vadd.f32 %v169, %v249
    %v251 = vpop.f32.mrb[0].mxu0
    %252 = vmatprep.mubr.f32.mxu0 0.0
    %253 = vmatmul.mubr.f32.gmra.mrb[0].mxu0 %v181
    %v254 = vpop.f32.mrb[0].mxu0
    %v255 = vadd.f32 %v174, %v254
    %v256 = vpop.f32.mrb[0].mxu0
    %257 = vdwg.mxu0
    %v258 = vmax.f32 %v250, 0.0
    %v259 = vmax.f32 %v255, 0.0
    %v260 = vld [vmem:[%s5] sm:$0xf]
    %v261 = vld [vmem:[%s6] sm:$0xf]
    %263 = vset.pattern.permute.xlu0 0
    %264 = vperm.xlu0 %263, %v261
    %v265 = vpop.permute.xlu0 %264
    %vm267 = vcmask 80896
    %v269 = vsel %vm267, %v260, 0
    %vm271 = vcmask 1041408
    %v273 = vsel %vm271, %v259, 0
    %275 = vmatprep.subr.mxu0 0.0
    %276 = vmatpush1.msra.mxu0 %v258
    %277 = vmatprep.subr.mxu0 0.0
    %278 = vmatpush1.msra.mxu0 %v273
    %279 = vmatprep.subr.mxu0 0.0
    %280 = vmatpush1.msra.mxu0 0.0
    %281 = vmatprep.subr.mxu0 0.0
    %282 = vmatpush1.msra.mxu0 0.0
    %283 = vmatprep.subr.mxu0 0.0
    %284 = vmatpush1.msra.mxu0 0.0
    %285 = vmatprep.subr.mxu0 0.0
    %286 = vmatpush1.msra.mxu0 0.0
    %287 = vmatprep.subr.mxu0 0.0
    %288 = vmatpush1.msra.mxu0 0.0
    %289 = vmatprep.subr.mxu0 0.0
    %290 = vmatpush1.msra.mxu0 0.0
    %291 = vmatprep.subr.mxu0 0.0
    %292 = vmatpush1.msra.mxu0 0.0
    %293 = vmatprep.subr.mxu0 0.0
    %294 = vmatpush1.msra.mxu0 0.0
    %295 = vmatprep.subr.mxu0 0.0
    %296 = vmatpush1.msra.mxu0 0.0
    %297 = vmatprep.subr.mxu0 0.0
    %298 = vmatpush1.msra.mxu0 0.0
    %299 = vmatprep.subr.mxu0 0.0
    %300 = vmatpush1.msra.mxu0 0.0
    %301 = vmatprep.subr.mxu0 0.0
    %302 = vmatpush1.msra.mxu0 0.0
    %303 = vmatprep.subr.mxu0 0.0
    %304 = vmatpush1.msra.mxu0 0.0
    %305 = vmatprep.subr.mxu0 0.0
    %306 = vmatpush1.msra.mxu0 0.0
    %307 = vmatprep.subr.mxu0 0.0
    %308 = vmatpush1.msra.mxu0 0.0
    %309 = vmatprep.subr.mxu0 0.0
    %310 = vmatpush1.msra.mxu0 0.0
    %311 = vmatprep.subr.mxu0 0.0
    %312 = vmatpush1.msra.mxu0 0.0
    %313 = vmatprep.subr.mxu0 0.0
    %314 = vmatpush1.msra.mxu0 0.0
    %315 = vmatprep.subr.mxu0 0.0
    %316 = vmatpush1.msra.mxu0 0.0
    %317 = vmatprep.subr.mxu0 0.0
    %318 = vmatpush1.msra.mxu0 0.0
    %319 = vmatprep.subr.mxu0 0.0
    %320 = vmatpush1.msra.mxu0 0.0
    %321 = vmatprep.subr.mxu0 0.0
    %322 = vmatpush1.msra.mxu0 0.0
    %323 = vmatprep.subr.mxu0 0.0
    %324 = vmatpush1.msra.mxu0 0.0
    %325 = vmatprep.subr.mxu0 0.0
    %326 = vmatpush1.msra.mxu0 0.0
    %327 = vmatprep.subr.mxu0 0.0
    %328 = vmatpush1.msra.mxu0 0.0
    %329 = vmatprep.subr.mxu0 0.0
    %330 = vmatpush1.msra.mxu0 0.0
    %331 = vmatprep.subr.mxu0 0.0
    %332 = vmatpush1.msra.mxu0 0.0
    %333 = vmatprep.subr.mxu0 0.0
    %334 = vmatpush1.msra.mxu0 0.0
    %335 = vmatprep.subr.mxu0 0.0
    %336 = vmatpush1.msra.mxu0 0.0
    %337 = vmatprep.subr.mxu0 0.0
    %338 = vmatpush1.msra.mxu0 0.0
    %339 = vmatprep.mubr.f32.mxu0 0.0
    %340 = vmatmul.mubr.f32.gmra.mrb[0].mxu0 %v269
    %v341 = vpop.f32.mrb[0].mxu0
    %v342 = vadd.f32 %v265, %v341
    %v343 = vpop.f32.mrb[0].mxu0
    %344 = vdwg.mxu0
    %345 = vst [vmem:[#allocation2] sm:$0xf] %v342
    // Predicated region
    $region30: #{tpu_custom_call.1} parent=1 // pred_check
      _
    $region31: #{tpu_custom_call.1} parent=1 // pred_check_branch
      %347 = sbr.rel (0) target = $region33
    $region32: #{tpu_custom_call.1} parent=1 // pred_region
      %s349 = ssub.s32 64, 64
      %350 = vsyncadd [#allocation3], %s349
      %s352 = sshll.u32 [#allocation2], 4
      %s353 = int_to_ptr.vmem [resolvable:$true] %s352
      %355 = dma.vmem_to_hbm [thread:$0]  %s353, 64, %s7, [#allocation3]
    $region33: #{tpu_custom_call.1} parent=1 // pred_fallthru
      _
    // Predicated region
    $region34: #{tpu_custom_call.1} parent=1 // pred_check
      _
    $region35: #{tpu_custom_call.1} parent=1 // pred_check_branch
      %357 = sbr.rel (0) target = $region37
    $region36: #{tpu_custom_call.1} parent=1 // pred_region
      %358 = dma.done [#allocation3], 64
    $region37: #{tpu_custom_call.1} parent=1 // pred_fallthru
      _
    %359 = vsyncpa [#allocation3], 1

</llo_original>
